<compile_context>
chip_gen: v6e
topology: v6e:2x2x1
jax: 0.10.0
libtpu: 0.0.40
codegen_flags: <defaults>
</compile_context>

<pallas_src>
import functools

import jax
import jax.numpy as jnp
from jax.experimental import pallas as pl
from jax.experimental.pallas import tpu as pltpu


LN_EPS = 1e-5


def _cdiv(a, b):
    return -(-a // b)


def _round_up(v, m):
    return _cdiv(v, m) * m


def _fused_conv_ln_kernel(xm_ref, xh_ref, xc_ref, xcc_ref,
                          wa_ref, wb_ref, wt_ref, wh_ref,
                          g_ref, b_ref, o_ref, *, eps, inv_n):
    """One (batch, output-row-block) tile: 3x3 stride-2 conv as 4 matmuls + LN.

    xm_ref : (1, tho, 2, wo_p, 2C)  main slab: row-pairs [bi*tho, (bi+1)*tho);
                                    dim2 = row parity; last dim packs
                                    (even col, odd col) channels.
    xh_ref : (1, 1, 1, wo_p, 2C)    row halo: even row of pair (bi+1)*tho.
    xc_ref : (1, tho, 2, C)         column halo (padded col 2*wo_p) for the
                                    slab's row pairs, both parities.
    xcc_ref: (1, 1, 2, C)           column halo of the row-halo pair.
    wa_ref : (2C, 2*co_p)           [row-tap0 col01 | row-tap2 col01]   (N-merged)
    wb_ref : (2C, co_p)             row-tap1 col01
    wt_ref : (2C, 2*co_p)           col-tap2: [same-row (W00_2;W01_2) | below (W2_2;0)]
    wh_ref : (3C, co_p)             row halo: [col01 ; col-tap2] of row-tap 2
    g_ref/b_ref : (1, co_p)         LayerNorm affine (zero-padded)
    o_ref  : (1, tho, wo_p, co_p)
    """
    tho = xm_ref.shape[1]
    wo_p = xm_ref.shape[3]
    c2 = xm_ref.shape[4]
    c = c2 // 2
    co_p = o_ref.shape[3]
    m = tho * wo_p
    f32 = jnp.float32

    # ---- operands ---------------------------------------------------------
    r_even = xm_ref[0, :, 0]                     # (tho, wo_p, 2C)
    r_odd = xm_ref[0, :, 1]                      # (tho, wo_p, 2C)
    # Free views: wo_p is a multiple of 8, so these reshapes are pure retilings.
    a0 = r_even.reshape(m, c2)                   # -> row taps 0 & 2
    a1 = r_odd.reshape(m, c2)                    # -> row tap 1

    # Column-tap-2 operand: first C channels of col-pair ow+1, even & odd rows
    # packed along lanes.  (The only constructed main operand — small K=2C copy.)
    body = jnp.concatenate([r_even[:, 1:, :c], r_odd[:, 1:, :c]], axis=-1)
    edge = xc_ref[0].reshape(tho, 1, c2)
    t_eo = jnp.concatenate([body, edge], axis=1).reshape(m, c2)

    # Row-halo operand (row-tap 2 of this block's last output row).
    hrow = xh_ref[0, 0, 0]                                        # (wo_p, 2C)
    corner = xcc_ref[0, 0]                                        # (2, C)
    h2 = jnp.concatenate([hrow[1:, :c], corner[0:1, :]], axis=0)  # (wo_p, C)
    h_full = jnp.concatenate([hrow, h2], axis=-1)                 # (wo_p, 3C)

    # ---- conv as 4 MXU matmuls (f32 accumulation) --------------------------
    pa = jnp.dot(a0, wa_ref[...], preferred_element_type=f32)     # (M, 2*co_p)
    p1 = jnp.dot(a1, wb_ref[...], preferred_element_type=f32)     # (M, co_p)
    pt = jnp.dot(t_eo, wt_ref[...], preferred_element_type=f32)   # (M, 2*co_p)
    ph = jnp.dot(h_full, wh_ref[...], preferred_element_type=f32)  # (wo_p, co_p)

    # Left halves contribute to the same output row; right halves are the
    # row-tap-2 contribution of slab row t, which belongs to output row t-1.
    same = (pa[:, :co_p] + p1 + pt[:, :co_p]).reshape(tho, wo_p, co_p)
    below = (pa[:, co_p:] + pt[:, co_p:]).reshape(tho, wo_p, co_p)
    if tho == 1:
        below_shift = ph.reshape(1, wo_p, co_p)
    else:
        below_shift = jnp.concatenate(
            [below[1:], ph.reshape(1, wo_p, co_p)], axis=0)
    y = same + below_shift                                        # (tho, wo_p, co_p)

    # ---- LayerNorm (padded weight lanes are exactly 0 => unmasked sums OK) --
    s1 = jnp.sum(y, axis=-1, keepdims=True)
    s2 = jnp.sum(y * y, axis=-1, keepdims=True)
    mean = s1 * inv_n
    var = jnp.maximum(s2 * inv_n - mean * mean, 0.0)
    inv_std = jax.lax.rsqrt(var + eps)
    out = (y - mean) * inv_std * g_ref[...] + b_ref[...]
    o_ref[0] = out.astype(o_ref.dtype)


@jax.jit
def conv_downsampler(x, w_conv, gamma, beta):
    """x: (N, H, W, C) NHWC.  w_conv: (2C, C, 3, 3) PyTorch OIHW.

    Returns Conv2d(3x3, stride 2, pad 1, no bias) + LayerNorm over channels:
    (N, ceil(H/2), ceil(W/2), 2C).
    """
    n, h, w, c = x.shape
    co = w_conv.shape[0]

    ho = (h - 1) // 2 + 1
    wo = (w - 1) // 2 + 1
    wo_p = _round_up(wo, 8)           # sublane-aligned output width
    co_p = _round_up(co, 128)         # lane-dense stores / matmul N

    # ---- output-row tile: ~1024 output pixels per grid step ----------------
    tho = max(1, min(ho, _cdiv(1024, wo_p)))
    # Keep >= 4 total grid steps so both v7x TensorCores get work.
    want_row_blocks = _cdiv(4, n)
    if want_row_blocks > 1:
        tho = min(tho, max(1, _cdiv(ho, want_row_blocks)))

    itemsize = jnp.dtype(x.dtype).itemsize

    def vmem_bytes(t):
        m = t * wo_p
        in_elems = (t * 2 * wo_p * 2 * c) + (wo_p * 2 * c) + (t * 2 * c) + 2 * c
        w_elems = 13 * c * co_p                      # wa + wb + wt + wh
        dbuf = 2 * ((in_elems + w_elems) * itemsize  # double-buffered inputs
                    + 2 * co_p * 4                   # gamma / beta (f32)
                    + m * co_p * itemsize)           # output block
        interm = m * co_p * 4 * 10 + m * 2 * c * itemsize   # f32 temps + t_eo
        return dbuf + interm

    # 12 MiB sizing budget: safe on v5e's 16 MiB default scoped VMEM and leaves
    # headroom on v6e/v7x.
    while tho > 1 and vmem_bytes(tho) > 12 * 1024 * 1024:
        tho = _cdiv(tho, 2)

    nb = _cdiv(ho, tho)
    ho_p = nb * tho

    # ---- input packing: one zero-pad pass, then only free reshapes ----------
    hp = 2 * (ho_p + 1)              # padded row r <-> original row r-1
    wpm = 2 * wo_p                   # main slab covers padded cols [0, 2*wo_p)
    w_keep = min(w, wpm - 1)
    xp = jnp.pad(x[:, :, :w_keep, :],
                 ((0, 0), (1, hp - 1 - h), (1, wpm - 1 - w_keep), (0, 0)))
    xr = xp.reshape(n, ho_p + 1, 2, wo_p, 2 * c)

    # Column halo = padded col 2*wo_p (a real column only when w == 2*wo_p).
    if w >= wpm:
        colp = jnp.pad(x[:, :, wpm - 1, :], ((0, 0), (1, hp - 1 - h), (0, 0)))
        xcol = colp.reshape(n, ho_p + 1, 2, c)
    else:
        xcol = jnp.zeros((n, ho_p + 1, 2, c), x.dtype)

    # ---- weights: OIHW -> merged matmul operands, zero-padded to co_p -------
    wt = jnp.transpose(w_conv, (2, 3, 1, 0)).astype(x.dtype)      # (3,3,C,Co)
    pad_n = ((0, 0), (0, co_p - co))
    w01 = [jnp.pad(jnp.concatenate([wt[i, 0], wt[i, 1]], axis=0), pad_n)
           for i in range(3)]                                      # (2C, co_p)
    w2 = [jnp.pad(wt[i, 2], pad_n) for i in range(3)]              # (C,  co_p)
    w_a = jnp.concatenate([w01[0], w01[2]], axis=1)                # (2C, 2*co_p)
    w_b = w01[1]                                                   # (2C, co_p)
    w_t2 = jnp.concatenate(
        [jnp.concatenate([w2[0], w2[1]], axis=0),                  # same row
         jnp.concatenate([w2[2], jnp.zeros_like(w2[2])], axis=0)],  # row below
        axis=1)                                                    # (2C, 2*co_p)
    w_h = jnp.concatenate([w01[2], w2[2]], axis=0)                 # (3C, co_p)
    g2 = jnp.pad(gamma.astype(jnp.float32).reshape(1, co), pad_n)
    b2 = jnp.pad(beta.astype(jnp.float32).reshape(1, co), pad_n)

    kernel = functools.partial(_fused_conv_ln_kernel, eps=LN_EPS, inv_n=1.0 / co)

    out = pl.pallas_call(
        kernel,
        out_shape=jax.ShapeDtypeStruct((n, ho_p, wo_p, co_p), x.dtype),
        grid_spec=pltpu.PrefetchScalarGridSpec(
            num_scalar_prefetch=0,
            grid=(n, nb),
            in_specs=[
                # Main slab: row pairs [bi*tho, (bi+1)*tho), full width.
                pl.BlockSpec((1, tho, 2, wo_p, 2 * c),
                             lambda bn, bi: (bn, bi, 0, 0, 0)),
                # Row halo: even row of pair (bi+1)*tho (always in bounds).
                pl.BlockSpec((1, 1, 1, wo_p, 2 * c),
                             lambda bn, bi: (bn, (bi + 1) * tho, 0, 0, 0)),
                # Column halo for the slab rows / for the halo row.
                pl.BlockSpec((1, tho, 2, c), lambda bn, bi: (bn, bi, 0, 0)),
                pl.BlockSpec((1, 1, 2, c),
                             lambda bn, bi: (bn, (bi + 1) * tho, 0, 0)),
                # Weights / LN params stay resident (constant index maps).
                pl.BlockSpec((2 * c, 2 * co_p), lambda bn, bi: (0, 0)),
                pl.BlockSpec((2 * c, co_p), lambda bn, bi: (0, 0)),
                pl.BlockSpec((2 * c, 2 * co_p), lambda bn, bi: (0, 0)),
                pl.BlockSpec((3 * c, co_p), lambda bn, bi: (0, 0)),
                pl.BlockSpec((1, co_p), lambda bn, bi: (0, 0)),
                pl.BlockSpec((1, co_p), lambda bn, bi: (0, 0)),
            ],
            out_specs=pl.BlockSpec((1, tho, wo_p, co_p),
                                   lambda bn, bi: (bn, bi, 0, 0)),
        ),
        compiler_params=pltpu.CompilerParams(
            dimension_semantics=("parallel", "parallel"),
            vmem_limit_bytes=int(min(
                64 * 1024 * 1024,
                max(32 * 1024 * 1024, 1.5 * vmem_bytes(tho))))),
    )(xr, xr, xcol, xcol, w_a, w_b, w_t2, w_h, g2, b2)

    return out[:, :ho, :wo, :co]


def _reference(x, w_conv, gamma, beta):
    """Pure-JAX reference matching the PyTorch module semantics."""
    y = jax.lax.conv_general_dilated(
        jnp.transpose(x, (0, 3, 1, 2)).astype(jnp.float32),
        w_conv.astype(jnp.float32),
        window_strides=(2, 2),
        padding=((1, 1), (1, 1)),
        dimension_numbers=("NCHW", "OIHW", "NCHW"),
    )
    y = jnp.transpose(y, (0, 2, 3, 1))
    mean = jnp.mean(y, axis=-1, keepdims=True)
    var = jnp.mean((y - mean) ** 2, axis=-1, keepdims=True)
    return (y - mean) * jax.lax.rsqrt(var + LN_EPS) * gamma + beta


def _check(x, w_conv, gamma, beta, atol, rtol):
    out = jax.block_until_ready(conv_downsampler(x, w_conv, gamma, beta))
    ref = _reference(x, w_conv, gamma, beta)
    n, h, w, _ = x.shape
    co = w_conv.shape[0]
    ho = (h - 1) // 2 + 1
    wo = (w - 1) // 2 + 1
    assert out.shape == (n, ho, wo, co), out.shape
    outf = out.astype(jnp.float32)
    err = float(jnp.max(jnp.abs(outf - ref)))
    assert jnp.allclose(outf, ref, atol=atol, rtol=rtol), err


if __name__ == "__main__":
    key = jax.random.PRNGKey(0)
    k1, k2, k3, k4 = jax.random.split(key, 4)

    def make(kx, n, h, w, dim, dtype):
        co = 2 * dim
        kx1, kx2 = jax.random.split(kx)
        x = jax.random.normal(kx1, (n, h, w, dim), dtype=jnp.float32).astype(dtype)
        wconv = (0.1 * jax.random.normal(
            kx2, (co, dim, 3, 3), dtype=jnp.float32)).astype(dtype)
        gamma = 1.0 + 0.01 * jnp.arange(co, dtype=jnp.float32)
        beta = 0.05 * jnp.arange(co, dtype=jnp.float32)
        return x, wconv, gamma, beta

    # Even shape: real column halo, channel padding to 128, 2x2 grid.
    _check(*make(k1, 2, 16, 16, 4, jnp.float32), atol=1e-4, rtol=1e-4)
    # Odd H/W: ragged output width, zero column halo, 4 row blocks.
    _check(*make(k2, 1, 15, 13, 4, jnp.float32), atol=1e-4, rtol=1e-4)
    # Single output row per block (tho == 1 path).
    _check(*make(k3, 1, 2, 16, 4, jnp.float32), atol=1e-4, rtol=1e-4)
    # bf16 path, co == co_p == 128.
    _check(*make(k4, 2, 8, 24, 64, jnp.bfloat16), atol=1e-1, rtol=5e-2)

    print("KERNEL_OK")
</pallas_src>

<mosaic_0001>
module attributes {stable_mosaic.version = 11 : i64} {
  func.func @_fused_conv_ln_kernel(%arg0: i32, %arg1: i32, %arg2: memref<1x4x2x8x8xf32, #tpu.memory_space<vmem>>, %arg3: memref<1x1x1x8x8xf32, #tpu.memory_space<vmem>>, %arg4: memref<1x4x2x4xf32, #tpu.memory_space<vmem>>, %arg5: memref<1x1x2x4xf32, #tpu.memory_space<vmem>>, %arg6: memref<8x256xf32, #tpu.memory_space<vmem>>, %arg7: memref<8x128xf32, #tpu.memory_space<vmem>>, %arg8: memref<8x256xf32, #tpu.memory_space<vmem>>, %arg9: memref<12x128xf32, #tpu.memory_space<vmem>>, %arg10: memref<1x128xf32, #tpu.memory_space<vmem>>, %arg11: memref<1x128xf32, #tpu.memory_space<vmem>>, %arg12: memref<1x4x8x128xf32, #tpu.memory_space<vmem>>) attributes {dimension_semantics = [#tpu.dimension_semantics<parallel>, #tpu.dimension_semantics<parallel>], iteration_bounds = array<i64: 2, 2>, scalar_prefetch = 0 : i64, scratch_operands = 0 : i64, tpu.core_type = #tpu.core_type<tc>, window_params = [{transform_indices = @transform_0, window_bounds = array<i64: 1, 4, 2, 8, 8>}, {transform_indices = @transform_1, window_bounds = array<i64: 1, 1, 1, 8, 8>}, {transform_indices = @transform_2, window_bounds = array<i64: 1, 4, 2, 4>}, {transform_indices = @transform_3, window_bounds = array<i64: 1, 1, 2, 4>}, {pipeline_mode = #tpu.pipeline_mode<synchronous>, transform_indices = @transform_4, window_bounds = array<i64: 8, 256>}, {pipeline_mode = #tpu.pipeline_mode<synchronous>, transform_indices = @transform_5, window_bounds = array<i64: 8, 128>}, {pipeline_mode = #tpu.pipeline_mode<synchronous>, transform_indices = @transform_6, window_bounds = array<i64: 8, 256>}, {pipeline_mode = #tpu.pipeline_mode<synchronous>, transform_indices = @transform_7, window_bounds = array<i64: 12, 128>}, {pipeline_mode = #tpu.pipeline_mode<synchronous>, transform_indices = @transform_8, window_bounds = array<i64: 1, 128>}, {pipeline_mode = #tpu.pipeline_mode<synchronous>, transform_indices = @transform_9, window_bounds = array<i64: 1, 128>}, {transform_indices = @transform_10, window_bounds = array<i64: 1, 4, 8, 128>}]} {
    %c0 = arith.constant 0 : index
    %c0_0 = arith.constant 0 : index
    %c0_1 = arith.constant 0 : index
    %c0_2 = arith.constant 0 : index
    %c0_3 = arith.constant 0 : index
    %0 = vector.load %arg2[%c0, %c0_0, %c0_1, %c0_2, %c0_3] : memref<1x4x2x8x8xf32, #tpu.memory_space<vmem>>, vector<1x4x1x8x8xf32>
    %1 = vector.shape_cast %0 : vector<1x4x1x8x8xf32> to vector<4x8x8xf32>
    %c0_4 = arith.constant 0 : index
    %c0_5 = arith.constant 0 : index
    %c1 = arith.constant 1 : index
    %c0_6 = arith.constant 0 : index
    %c0_7 = arith.constant 0 : index
    %2 = vector.load %arg2[%c0_4, %c0_5, %c1, %c0_6, %c0_7] : memref<1x4x2x8x8xf32, #tpu.memory_space<vmem>>, vector<1x4x1x8x8xf32>
    %3 = vector.shape_cast %2 : vector<1x4x1x8x8xf32> to vector<4x8x8xf32>
    %4 = vector.shape_cast %1 : vector<4x8x8xf32> to vector<32x8xf32>
    %5 = vector.shape_cast %3 : vector<4x8x8xf32> to vector<32x8xf32>
    %6 = vector.extract_strided_slice %1 {offsets = [0, 1, 0], sizes = [4, 7, 4], strides = [1, 1, 1]} : vector<4x8x8xf32> to vector<4x7x4xf32>
    %7 = vector.extract_strided_slice %3 {offsets = [0, 1, 0], sizes = [4, 7, 4], strides = [1, 1, 1]} : vector<4x8x8xf32> to vector<4x7x4xf32>
    %8 = tpu.concatenate %6, %7 in 2 : vector<4x7x4xf32>, vector<4x7x4xf32> -> vector<4x7x8xf32>
    %c0_8 = arith.constant 0 : index
    %c0_9 = arith.constant 0 : index
    %c0_10 = arith.constant 0 : index
    %c0_11 = arith.constant 0 : index
    %9 = vector.load %arg4[%c0_8, %c0_9, %c0_10, %c0_11] : memref<1x4x2x4xf32, #tpu.memory_space<vmem>>, vector<1x4x2x4xf32>
    %10 = vector.shape_cast %9 : vector<1x4x2x4xf32> to vector<4x2x4xf32>
    %11 = vector.shape_cast %10 : vector<4x2x4xf32> to vector<4x1x8xf32>
    %12 = tpu.concatenate %8, %11 in 1 : vector<4x7x8xf32>, vector<4x1x8xf32> -> vector<4x8x8xf32>
    %13 = vector.shape_cast %12 : vector<4x8x8xf32> to vector<32x8xf32>
    %c0_12 = arith.constant 0 : index
    %c0_13 = arith.constant 0 : index
    %c0_14 = arith.constant 0 : index
    %c0_15 = arith.constant 0 : index
    %c0_16 = arith.constant 0 : index
    %14 = vector.load %arg3[%c0_12, %c0_13, %c0_14, %c0_15, %c0_16] : memref<1x1x1x8x8xf32, #tpu.memory_space<vmem>>, vector<1x1x1x8x8xf32>
    %15 = vector.shape_cast %14 : vector<1x1x1x8x8xf32> to vector<8x8xf32>
    %c0_17 = arith.constant 0 : index
    %c0_18 = arith.constant 0 : index
    %c0_19 = arith.constant 0 : index
    %c0_20 = arith.constant 0 : index
    %16 = vector.load %arg5[%c0_17, %c0_18, %c0_19, %c0_20] : memref<1x1x2x4xf32, #tpu.memory_space<vmem>>, vector<1x1x2x4xf32>
    %17 = vector.shape_cast %16 : vector<1x1x2x4xf32> to vector<2x4xf32>
    %18 = vector.extract_strided_slice %15 {offsets = [1, 0], sizes = [7, 4], strides = [1, 1]} : vector<8x8xf32> to vector<7x4xf32>
    %19 = vector.extract_strided_slice %17 {offsets = [0, 0], sizes = [1, 4], strides = [1, 1]} : vector<2x4xf32> to vector<1x4xf32>
    %20 = tpu.concatenate %18, %19 in 0 : vector<7x4xf32>, vector<1x4xf32> -> vector<8x4xf32>
    %21 = tpu.concatenate %15, %20 in 1 : vector<8x8xf32>, vector<8x4xf32> -> vector<8x12xf32>
    %c0_21 = arith.constant 0 : index
    %c0_22 = arith.constant 0 : index
    %22 = vector.load %arg6[%c0_21, %c0_22] : memref<8x256xf32, #tpu.memory_space<vmem>>, vector<8x256xf32>
    %cst = arith.constant dense<0.000000e+00> : vector<32x256xf32>
    %23 = tpu.matmul %4, %22, %cst {dimension_numbers = #tpu.dot_dimension_numbers<[1], [0], [0], [1], [0, 0, 1, 1], [], []>} : vector<32x8xf32>, vector<8x256xf32>, vector<32x256xf32> -> vector<32x256xf32>
    %c0_23 = arith.constant 0 : index
    %c0_24 = arith.constant 0 : index
    %24 = vector.load %arg7[%c0_23, %c0_24] : memref<8x128xf32, #tpu.memory_space<vmem>>, vector<8x128xf32>
    %cst_25 = arith.constant dense<0.000000e+00> : vector<32x128xf32>
    %25 = tpu.matmul %5, %24, %cst_25 {dimension_numbers = #tpu.dot_dimension_numbers<[1], [0], [0], [1], [0, 0, 1, 1], [], []>} : vector<32x8xf32>, vector<8x128xf32>, vector<32x128xf32> -> vector<32x128xf32>
    %c0_26 = arith.constant 0 : index
    %c0_27 = arith.constant 0 : index
    %26 = vector.load %arg8[%c0_26, %c0_27] : memref<8x256xf32, #tpu.memory_space<vmem>>, vector<8x256xf32>
    %cst_28 = arith.constant dense<0.000000e+00> : vector<32x256xf32>
    %27 = tpu.matmul %13, %26, %cst_28 {dimension_numbers = #tpu.dot_dimension_numbers<[1], [0], [0], [1], [0, 0, 1, 1], [], []>} : vector<32x8xf32>, vector<8x256xf32>, vector<32x256xf32> -> vector<32x256xf32>
    %c0_29 = arith.constant 0 : index
    %c0_30 = arith.constant 0 : index
    %28 = vector.load %arg9[%c0_29, %c0_30] : memref<12x128xf32, #tpu.memory_space<vmem>>, vector<12x128xf32>
    %cst_31 = arith.constant dense<0.000000e+00> : vector<8x128xf32>
    %29 = tpu.matmul %21, %28, %cst_31 {dimension_numbers = #tpu.dot_dimension_numbers<[1], [0], [0], [1], [0, 0, 1, 1], [], []>} : vector<8x12xf32>, vector<12x128xf32>, vector<8x128xf32> -> vector<8x128xf32>
    %30 = vector.extract_strided_slice %23 {offsets = [0, 0], sizes = [32, 128], strides = [1, 1]} : vector<32x256xf32> to vector<32x128xf32>
    %31 = arith.addf %30, %25 : vector<32x128xf32>
    %32 = vector.extract_strided_slice %27 {offsets = [0, 0], sizes = [32, 128], strides = [1, 1]} : vector<32x256xf32> to vector<32x128xf32>
    %33 = arith.addf %31, %32 : vector<32x128xf32>
    %34 = vector.shape_cast %33 : vector<32x128xf32> to vector<4x8x128xf32>
    %35 = vector.extract_strided_slice %23 {offsets = [0, 128], sizes = [32, 128], strides = [1, 1]} : vector<32x256xf32> to vector<32x128xf32>
    %36 = vector.extract_strided_slice %27 {offsets = [0, 128], sizes = [32, 128], strides = [1, 1]} : vector<32x256xf32> to vector<32x128xf32>
    %37 = arith.addf %35, %36 : vector<32x128xf32>
    %38 = vector.shape_cast %37 : vector<32x128xf32> to vector<4x8x128xf32>
    %39 = vector.extract_strided_slice %38 {offsets = [1, 0, 0], sizes = [3, 8, 128], strides = [1, 1, 1]} : vector<4x8x128xf32> to vector<3x8x128xf32>
    %40 = vector.shape_cast %29 : vector<8x128xf32> to vector<1x8x128xf32>
    %41 = tpu.concatenate %39, %40 in 0 : vector<3x8x128xf32>, vector<1x8x128xf32> -> vector<4x8x128xf32>
    %42 = arith.addf %34, %41 : vector<4x8x128xf32>
    %cst_32 = arith.constant dense<0.000000e+00> : vector<4x8xf32>
    %43 = vector.multi_reduction <add>, %42, %cst_32 [2] : vector<4x8x128xf32> to vector<4x8xf32>
    %44 = vector.shape_cast %43 : vector<4x8xf32> to vector<4x8x1xf32>
    %45 = arith.mulf %42, %42 : vector<4x8x128xf32>
    %cst_33 = arith.constant dense<0.000000e+00> : vector<4x8xf32>
    %46 = vector.multi_reduction <add>, %45, %cst_33 [2] : vector<4x8x128xf32> to vector<4x8xf32>
    %47 = vector.shape_cast %46 : vector<4x8xf32> to vector<4x8x1xf32>
    %cst_34 = arith.constant 1.250000e-01 : f32
    %48 = vector.broadcast %cst_34 : f32 to vector<4x8x1xf32>
    %49 = arith.mulf %44, %48 : vector<4x8x1xf32>
    %cst_35 = arith.constant 1.250000e-01 : f32
    %50 = vector.broadcast %cst_35 : f32 to vector<4x8x1xf32>
    %51 = arith.mulf %47, %50 : vector<4x8x1xf32>
    %52 = arith.mulf %49, %49 : vector<4x8x1xf32>
    %53 = arith.subf %51, %52 : vector<4x8x1xf32>
    %cst_36 = arith.constant 0.000000e+00 : f32
    %54 = vector.broadcast %cst_36 : f32 to vector<4x8x1xf32>
    %55 = arith.maximumf %53, %54 : vector<4x8x1xf32>
    %cst_37 = arith.constant 9.99999974E-6 : f32
    %56 = vector.broadcast %cst_37 : f32 to vector<4x8x1xf32>
    %57 = arith.addf %55, %56 : vector<4x8x1xf32>
    %58 = math.rsqrt %57 : vector<4x8x1xf32>
    %59 = vector.broadcast %49 : vector<4x8x1xf32> to vector<4x8x128xf32>
    %60 = arith.subf %42, %59 : vector<4x8x128xf32>
    %61 = vector.broadcast %58 : vector<4x8x1xf32> to vector<4x8x128xf32>
    %62 = arith.mulf %60, %61 : vector<4x8x128xf32>
    %c0_38 = arith.constant 0 : index
    %c0_39 = arith.constant 0 : index
    %63 = vector.load %arg10[%c0_38, %c0_39] : memref<1x128xf32, #tpu.memory_space<vmem>>, vector<1x128xf32>
    %64 = vector.shape_cast %63 : vector<1x128xf32> to vector<1x1x128xf32>
    %65 = vector.broadcast %64 : vector<1x1x128xf32> to vector<4x8x128xf32>
    %66 = arith.mulf %62, %65 : vector<4x8x128xf32>
    %c0_40 = arith.constant 0 : index
    %c0_41 = arith.constant 0 : index
    %67 = vector.load %arg11[%c0_40, %c0_41] : memref<1x128xf32, #tpu.memory_space<vmem>>, vector<1x128xf32>
    %68 = vector.shape_cast %67 : vector<1x128xf32> to vector<1x1x128xf32>
    %69 = vector.broadcast %68 : vector<1x1x128xf32> to vector<4x8x128xf32>
    %70 = arith.addf %66, %69 : vector<4x8x128xf32>
    %c0_42 = arith.constant 0 : index
    %c0_43 = arith.constant 0 : index
    %c0_44 = arith.constant 0 : index
    %c0_45 = arith.constant 0 : index
    %71 = vector.load %arg12[%c0_42, %c0_43, %c0_44, %c0_45] : memref<1x4x8x128xf32, #tpu.memory_space<vmem>>, vector<1x4x8x128xf32>
    %72 = vector.shape_cast %71 : vector<1x4x8x128xf32> to vector<4x8x128xf32>
    %73 = vector.shape_cast %70 : vector<4x8x128xf32> to vector<1x4x8x128xf32>
    tpu.vector_store %arg12[%c0_42, %c0_43, %c0_44, %c0_45], %73 {strides = array<i32>} : memref<1x4x8x128xf32, #tpu.memory_space<vmem>>, vector<1x4x8x128xf32>,
    return
  }
  func.func @transform_0(%arg0: i32, %arg1: i32) -> (i32, i32, i32, i32, i32) {
    %c0_i32 = arith.constant 0 : i32
    %c0_i32_0 = arith.constant 0 : i32
    %c0_i32_1 = arith.constant 0 : i32
    %c0_i32_2 = arith.constant 0 : i32
    return %arg0, %arg1, %c0_i32, %c0_i32_0, %c0_i32_1 : i32, i32, i32, i32, i32
  }
  func.func @transform_1(%arg0: i32, %arg1: i32) -> (i32, i32, i32, i32, i32) {
    %c1_i32 = arith.constant 1 : i32
    %0 = arith.addi %arg1, %c1_i32 : i32
    %c4_i32 = arith.constant 4 : i32
    %1 = arith.muli %0, %c4_i32 : i32
    %c0_i32 = arith.constant 0 : i32
    %c0_i32_0 = arith.constant 0 : i32
    %c0_i32_1 = arith.constant 0 : i32
    %c0_i32_2 = arith.constant 0 : i32
    return %arg0, %1, %c0_i32, %c0_i32_0, %c0_i32_1 : i32, i32, i32, i32, i32
  }
  func.func @transform_2(%arg0: i32, %arg1: i32) -> (i32, i32, i32, i32) {
    %c0_i32 = arith.constant 0 : i32
    %c0_i32_0 = arith.constant 0 : i32
    %c0_i32_1 = arith.constant 0 : i32
    return %arg0, %arg1, %c0_i32, %c0_i32_0 : i32, i32, i32, i32
  }
  func.func @transform_3(%arg0: i32, %arg1: i32) -> (i32, i32, i32, i32) {
    %c1_i32 = arith.constant 1 : i32
    %0 = arith.addi %arg1, %c1_i32 : i32
    %c4_i32 = arith.constant 4 : i32
    %1 = arith.muli %0, %c4_i32 : i32
    %c0_i32 = arith.constant 0 : i32
    %c0_i32_0 = arith.constant 0 : i32
    %c0_i32_1 = arith.constant 0 : i32
    return %arg0, %1, %c0_i32, %c0_i32_0 : i32, i32, i32, i32
  }
  func.func @transform_4(%arg0: i32, %arg1: i32) -> (i32, i32) {
    %c0_i32 = arith.constant 0 : i32
    %c0_i32_0 = arith.constant 0 : i32
    %c0_i32_1 = arith.constant 0 : i32
    return %c0_i32, %c0_i32_0 : i32, i32
  }
  func.func @transform_5(%arg0: i32, %arg1: i32) -> (i32, i32) {
    %c0_i32 = arith.constant 0 : i32
    %c0_i32_0 = arith.constant 0 : i32
    %c0_i32_1 = arith.constant 0 : i32
    return %c0_i32, %c0_i32_0 : i32, i32
  }
  func.func @transform_6(%arg0: i32, %arg1: i32) -> (i32, i32) {
    %c0_i32 = arith.constant 0 : i32
    %c0_i32_0 = arith.constant 0 : i32
    %c0_i32_1 = arith.constant 0 : i32
    return %c0_i32, %c0_i32_0 : i32, i32
  }
  func.func @transform_7(%arg0: i32, %arg1: i32) -> (i32, i32) {
    %c0_i32 = arith.constant 0 : i32
    %c0_i32_0 = arith.constant 0 : i32
    %c0_i32_1 = arith.constant 0 : i32
    return %c0_i32, %c0_i32_0 : i32, i32
  }
  func.func @transform_8(%arg0: i32, %arg1: i32) -> (i32, i32) {
    %c0_i32 = arith.constant 0 : i32
    %c0_i32_0 = arith.constant 0 : i32
    %c0_i32_1 = arith.constant 0 : i32
    return %c0_i32, %c0_i32_0 : i32, i32
  }
  func.func @transform_9(%arg0: i32, %arg1: i32) -> (i32, i32) {
    %c0_i32 = arith.constant 0 : i32
    %c0_i32_0 = arith.constant 0 : i32
    %c0_i32_1 = arith.constant 0 : i32
    return %c0_i32, %c0_i32_0 : i32, i32
  }
  func.func @transform_10(%arg0: i32, %arg1: i32) -> (i32, i32, i32, i32) {
    %c0_i32 = arith.constant 0 : i32
    %c0_i32_0 = arith.constant 0 : i32
    %c0_i32_1 = arith.constant 0 : i32
    return %arg0, %arg1, %c0_i32, %c0_i32_0 : i32, i32, i32, i32
  }
}

</mosaic_0001>

<llo_original>
// kernel: conv_downsampler.1
$region0: #{conv_downsampler.1}
  #allocation0 [shape = 'u32[]', space=smem, size = 0x4, offset = 0x4, fixed_abs, tag = 'smem constant byte address 0x4 - core index']
  #allocation1 [shape = 'u32[144,128]{1,0:T(1,128)}', space=vmem, size = 0x12000, scoped, tag = 'internal scratch']
  %s0 = inlined_call_operand.vmem [shape: f32[2,9,2,8,8], index: 0, kind: input, shape index: {}, may-alias: {0,1}]
  %s1 = inlined_call_operand.vmem [shape: f32[2,9,2,8,8], index: 1, kind: input, shape index: {}, may-alias: {0,1}]
  %s2 = inlined_call_operand.vmem [shape: f32[2,9,2,4], index: 2, kind: input, shape index: {}, may-alias: {2,3}]
  %s3 = inlined_call_operand.vmem [shape: f32[2,9,2,4], index: 3, kind: input, shape index: {}, may-alias: {2,3}]
  %s4 = inlined_call_operand.vmem [shape: f32[8,256], index: 4, kind: input, shape index: {}]
  %s5 = inlined_call_operand.vmem [shape: f32[8,128], index: 5, kind: input, shape index: {}]
  %s6 = inlined_call_operand.vmem [shape: f32[8,256], index: 6, kind: input, shape index: {}]
  %s7 = inlined_call_operand.vmem [shape: f32[12,128], index: 7, kind: input, shape index: {}]
  %s8 = inlined_call_operand.vmem [shape: f32[1,128], index: 8, kind: input, shape index: {}]
  %s9 = inlined_call_operand.vmem [shape: f32[1,128], index: 9, kind: input, shape index: {}]
  %s10 = inlined_call_operand.hbm [shape: f32[2,8,8,128], index: 10, kind: output, shape index: {}]
  %s11 = sld [smem:[#allocation0]]
  $region73: #{conv_downsampler.1} parent=0
    _
  %s13 = ssub.s32 1, %s11
  %s14 = scalar_select 0, %s13, %s11
  $region1: #{conv_downsampler.1} parent=0
    #allocation2 [shape = 'u8[32768]{0}', space=vmem, size = 0x8000, scoped, tag = 'output window, operand 0']
    #allocation3 [shape = 's32[2]{0}', space=sflag, size = 0x8, scoped, tag = 'scoped memory for conv_downsampler.1']
    %15 = vsyncpa [#allocation3], 0
    %s16 = scalar_lea.sflag [#allocation3], 1
    %17 = vsyncpa %s16, 0
    loop: start=0, step=1, limit=6
    $region2: #{conv_downsampler.1} parent=1 // loop_pre_header
      _
    $region3: #{conv_downsampler.1} parent=1 // loop_header
      %s19 = sphi 0, %s23
      %p20 = scmp.ge.s32.totalorder %s19, 6
      %s26 = sphi 0, %s38
      %s27 = sphi 0, %s34
      %s28 = sphi 0, %s26
      %s29 = sphi 0, %s27
      %s30 = sphi 0, %s28
      %s31 = sphi 0, %s29
      %s43 = sphi 0, %s45
      %s46 = sphi 0, %s43
      %s47 = sphi 0, %s46
      %s63 = sphi 0, %s47
      %s75 = sphi 0, %s77
      %s78 = sphi 0, %s75
      %s79 = sphi 0, %s78
      %s95 = sphi 0, %s79
      %s103 = sphi 0, %s105
      %s106 = sphi 0, %s103
      %s107 = sphi 0, %s106
      %s123 = sphi 0, %s107
      %s135 = sphi 0, %s137
      %s138 = sphi 0, %s135
      %s139 = sphi 0, %s138
      %s155 = sphi 0, %s139
      %s159 = sphi 0, %s159
      %s161 = sphi 0, %s159
      %s162 = sphi 0, %s161
      %s176 = sphi 0, %s162
      %s180 = sphi 0, %s180
      %s182 = sphi 0, %s180
      %s183 = sphi 0, %s182
      %s197 = sphi 0, %s183
      %s201 = sphi 0, %s201
      %s203 = sphi 0, %s201
      %s204 = sphi 0, %s203
      %s218 = sphi 0, %s204
      %s222 = sphi 0, %s222
      %s224 = sphi 0, %s222
      %s225 = sphi 0, %s224
      %s239 = sphi 0, %s225
      %s243 = sphi 0, %s243
      %s245 = sphi 0, %s243
      %s246 = sphi 0, %s245
      %s260 = sphi 0, %s246
      %s264 = sphi 0, %s264
      %s266 = sphi 0, %s264
      %s267 = sphi 0, %s266
      %s281 = sphi 0, %s267
      %s289 = sphi 0, %s291
      %s292 = sphi 0, %s289
      %s293 = sphi 0, %s292
      %s309 = sphi 0, %s293
    $region4: #{conv_downsampler.1} parent=1 // loop_header_branch
      %22 = sbr.rel (%p20) target = $region8
    $region5: #{conv_downsampler.1} parent=1 // loop_body
      %s24 = ssub.s32 %s19, 1
      %s25 = ssub.s32 %s19, 2
      %s32 = sadd.s32 1, %s27
      %p33 = scmp.ge.s32.totalorder %s32, 2
      %s34 = scalar_select %p33, 0, %s32
      %s35 = sadd.s32 1, %s26
      %s36 = scalar_select %p33, %s35, %s26
      %p37 = scmp.ge.s32.totalorder %s36, 2
      %s38 = scalar_select %p37, 0, %s36
      %s39 = ssub.s32 %s26, %s38
      %s40 = ssub.s32 %s27, %s34
      %s41 = sor.u32 %s39, %s40
      %p42 = scmp.eq.s32.totalorder %s41, 0
      %s44 = sadd.s32 %s43, 1
      %s45 = scalar_select %p42, %s43, %s44
      %p48 = pneg %p42
      %p49 = scmp.eq.s32.totalorder %s19, 3
      %p50 = por %p48, %p49
      %p51 = scmp.ne.s32.totalorder %s43, %s46
      %p52 = scmp.eq.s32.totalorder %s19, 0
      %p53 = por %p51, %p52
      %p54 = scmp.ne.s32.totalorder %s43, %s46
      %p55 = scmp.eq.s32.totalorder %s24, 3
      %p56 = por %p54, %p55
      %p57 = scmp.ne.s32.totalorder %s46, %s47
      %p58 = scmp.eq.s32.totalorder %s24, 0
      %p59 = por %p57, %p58
      %p60 = scmp.ne.s32.totalorder %s46, %s47
      %p61 = scmp.eq.s32.totalorder %s25, 3
      %p62 = por %p60, %p61
      %p64 = scmp.ne.s32.totalorder %s47, %s63
      %p65 = scmp.eq.s32.totalorder %s25, 0
      %p66 = por %p64, %p65
      %s67 = sadd.s32 %s27, 1
      %s68 = smul.u32 %s67, 4
      %s69 = sadd.s32 %s34, 1
      %s70 = smul.u32 %s69, 4
      %s71 = ssub.s32 %s26, %s38
      %s72 = ssub.s32 %s68, %s70
      %s73 = sor.u32 %s71, %s72
      %p74 = scmp.eq.s32.totalorder %s73, 0
      %s76 = sadd.s32 %s75, 1
      %s77 = scalar_select %p74, %s75, %s76
      %p80 = pneg %p74
      %p81 = scmp.eq.s32.totalorder %s19, 3
      %p82 = por %p80, %p81
      %p83 = scmp.ne.s32.totalorder %s75, %s78
      %p84 = scmp.eq.s32.totalorder %s19, 0
      %p85 = por %p83, %p84
      %p86 = scmp.ne.s32.totalorder %s75, %s78
      %p87 = scmp.eq.s32.totalorder %s24, 3
      %p88 = por %p86, %p87
      %p89 = scmp.ne.s32.totalorder %s78, %s79
      %p90 = scmp.eq.s32.totalorder %s24, 0
      %p91 = por %p89, %p90
      %p92 = scmp.ne.s32.totalorder %s78, %s79
      %p93 = scmp.eq.s32.totalorder %s25, 3
      %p94 = por %p92, %p93
      %p96 = scmp.ne.s32.totalorder %s79, %s95
      %p97 = scmp.eq.s32.totalorder %s25, 0
      %p98 = por %p96, %p97
      %s99 = ssub.s32 %s26, %s38
      %s100 = ssub.s32 %s27, %s34
      %s101 = sor.u32 %s99, %s100
      %p102 = scmp.eq.s32.totalorder %s101, 0
      %s104 = sadd.s32 %s103, 1
      %s105 = scalar_select %p102, %s103, %s104
      %p108 = pneg %p102
      %p109 = scmp.eq.s32.totalorder %s19, 3
      %p110 = por %p108, %p109
      %p111 = scmp.ne.s32.totalorder %s103, %s106
      %p112 = scmp.eq.s32.totalorder %s19, 0
      %p113 = por %p111, %p112
      %p114 = scmp.ne.s32.totalorder %s103, %s106
      %p115 = scmp.eq.s32.totalorder %s24, 3
      %p116 = por %p114, %p115
      %p117 = scmp.ne.s32.totalorder %s106, %s107
      %p118 = scmp.eq.s32.totalorder %s24, 0
      %p119 = por %p117, %p118
      %p120 = scmp.ne.s32.totalorder %s106, %s107
      %p121 = scmp.eq.s32.totalorder %s25, 3
      %p122 = por %p120, %p121
      %p124 = scmp.ne.s32.totalorder %s107, %s123
      %p125 = scmp.eq.s32.totalorder %s25, 0
      %p126 = por %p124, %p125
      %s127 = sadd.s32 %s27, 1
      %s128 = smul.u32 %s127, 4
      %s129 = sadd.s32 %s34, 1
      %s130 = smul.u32 %s129, 4
      %s131 = ssub.s32 %s26, %s38
      %s132 = ssub.s32 %s128, %s130
      %s133 = sor.u32 %s131, %s132
      %p134 = scmp.eq.s32.totalorder %s133, 0
      %s136 = sadd.s32 %s135, 1
      %s137 = scalar_select %p134, %s135, %s136
      %p140 = pneg %p134
      %p141 = scmp.eq.s32.totalorder %s19, 3
      %p142 = por %p140, %p141
      %p143 = scmp.ne.s32.totalorder %s135, %s138
      %p144 = scmp.eq.s32.totalorder %s19, 0
      %p145 = por %p143, %p144
      %p146 = scmp.ne.s32.totalorder %s135, %s138
      %p147 = scmp.eq.s32.totalorder %s24, 3
      %p148 = por %p146, %p147
      %p149 = scmp.ne.s32.totalorder %s138, %s139
      %p150 = scmp.eq.s32.totalorder %s24, 0
      %p151 = por %p149, %p150
      %p152 = scmp.ne.s32.totalorder %s138, %s139
      %p153 = scmp.eq.s32.totalorder %s25, 3
      %p154 = por %p152, %p153
      %p156 = scmp.ne.s32.totalorder %s139, %s155
      %p157 = scmp.eq.s32.totalorder %s25, 0
      %p158 = por %p156, %p157
      %s160 = sadd.s32 %s159, 1
      %p163 = scmp.eq.s32.totalorder %s19, 3
      %p164 = scmp.ne.s32.totalorder %s159, %s161
      %p165 = scmp.eq.s32.totalorder %s19, 0
      %p166 = por %p164, %p165
      %p167 = scmp.ne.s32.totalorder %s159, %s161
      %p168 = scmp.eq.s32.totalorder %s24, 3
      %p169 = por %p167, %p168
      %p170 = scmp.ne.s32.totalorder %s161, %s162
      %p171 = scmp.eq.s32.totalorder %s24, 0
      %p172 = por %p170, %p171
      %p173 = scmp.ne.s32.totalorder %s161, %s162
      %p174 = scmp.eq.s32.totalorder %s25, 3
      %p175 = por %p173, %p174
      %p177 = scmp.ne.s32.totalorder %s162, %s176
      %p178 = scmp.eq.s32.totalorder %s25, 0
      %p179 = por %p177, %p178
      %s181 = sadd.s32 %s180, 1
      %p184 = scmp.eq.s32.totalorder %s19, 3
      %p185 = scmp.ne.s32.totalorder %s180, %s182
      %p186 = scmp.eq.s32.totalorder %s19, 0
      %p187 = por %p185, %p186
      %p188 = scmp.ne.s32.totalorder %s180, %s182
      %p189 = scmp.eq.s32.totalorder %s24, 3
      %p190 = por %p188, %p189
      %p191 = scmp.ne.s32.totalorder %s182, %s183
      %p192 = scmp.eq.s32.totalorder %s24, 0
      %p193 = por %p191, %p192
      %p194 = scmp.ne.s32.totalorder %s182, %s183
      %p195 = scmp.eq.s32.totalorder %s25, 3
      %p196 = por %p194, %p195
      %p198 = scmp.ne.s32.totalorder %s183, %s197
      %p199 = scmp.eq.s32.totalorder %s25, 0
      %p200 = por %p198, %p199
      %s202 = sadd.s32 %s201, 1
      %p205 = scmp.eq.s32.totalorder %s19, 3
      %p206 = scmp.ne.s32.totalorder %s201, %s203
      %p207 = scmp.eq.s32.totalorder %s19, 0
      %p208 = por %p206, %p207
      %p209 = scmp.ne.s32.totalorder %s201, %s203
      %p210 = scmp.eq.s32.totalorder %s24, 3
      %p211 = por %p209, %p210
      %p212 = scmp.ne.s32.totalorder %s203, %s204
      %p213 = scmp.eq.s32.totalorder %s24, 0
      %p214 = por %p212, %p213
      %p215 = scmp.ne.s32.totalorder %s203, %s204
      %p216 = scmp.eq.s32.totalorder %s25, 3
      %p217 = por %p215, %p216
      %p219 = scmp.ne.s32.totalorder %s204, %s218
      %p220 = scmp.eq.s32.totalorder %s25, 0
      %p221 = por %p219, %p220
      %s223 = sadd.s32 %s222, 1
      %p226 = scmp.eq.s32.totalorder %s19, 3
      %p227 = scmp.ne.s32.totalorder %s222, %s224
      %p228 = scmp.eq.s32.totalorder %s19, 0
      %p229 = por %p227, %p228
      %p230 = scmp.ne.s32.totalorder %s222, %s224
      %p231 = scmp.eq.s32.totalorder %s24, 3
      %p232 = por %p230, %p231
      %p233 = scmp.ne.s32.totalorder %s224, %s225
      %p234 = scmp.eq.s32.totalorder %s24, 0
      %p235 = por %p233, %p234
      %p236 = scmp.ne.s32.totalorder %s224, %s225
      %p237 = scmp.eq.s32.totalorder %s25, 3
      %p238 = por %p236, %p237
      %p240 = scmp.ne.s32.totalorder %s225, %s239
      %p241 = scmp.eq.s32.totalorder %s25, 0
      %p242 = por %p240, %p241
      %s244 = sadd.s32 %s243, 1
      %p247 = scmp.eq.s32.totalorder %s19, 3
      %p248 = scmp.ne.s32.totalorder %s243, %s245
      %p249 = scmp.eq.s32.totalorder %s19, 0
      %p250 = por %p248, %p249
      %p251 = scmp.ne.s32.totalorder %s243, %s245
      %p252 = scmp.eq.s32.totalorder %s24, 3
      %p253 = por %p251, %p252
      %p254 = scmp.ne.s32.totalorder %s245, %s246
      %p255 = scmp.eq.s32.totalorder %s24, 0
      %p256 = por %p254, %p255
      %p257 = scmp.ne.s32.totalorder %s245, %s246
      %p258 = scmp.eq.s32.totalorder %s25, 3
      %p259 = por %p257, %p258
      %p261 = scmp.ne.s32.totalorder %s246, %s260
      %p262 = scmp.eq.s32.totalorder %s25, 0
      %p263 = por %p261, %p262
      %s265 = sadd.s32 %s264, 1
      %p268 = scmp.eq.s32.totalorder %s19, 3
      %p269 = scmp.ne.s32.totalorder %s264, %s266
      %p270 = scmp.eq.s32.totalorder %s19, 0
      %p271 = por %p269, %p270
      %p272 = scmp.ne.s32.totalorder %s264, %s266
      %p273 = scmp.eq.s32.totalorder %s24, 3
      %p274 = por %p272, %p273
      %p275 = scmp.ne.s32.totalorder %s266, %s267
      %p276 = scmp.eq.s32.totalorder %s24, 0
      %p277 = por %p275, %p276
      %p278 = scmp.ne.s32.totalorder %s266, %s267
      %p279 = scmp.eq.s32.totalorder %s25, 3
      %p280 = por %p278, %p279
      %p282 = scmp.ne.s32.totalorder %s267, %s281
      %p283 = scmp.eq.s32.totalorder %s25, 0
      %p284 = por %p282, %p283
      %s285 = ssub.s32 %s26, %s38
      %s286 = ssub.s32 %s27, %s34
      %s287 = sor.u32 %s285, %s286
      %p288 = scmp.eq.s32.totalorder %s287, 0
      %s290 = sadd.s32 %s289, 1
      %s291 = scalar_select %p288, %s289, %s290
      %p294 = pneg %p288
      %p295 = scmp.eq.s32.totalorder %s19, 3
      %p296 = por %p294, %p295
      %p297 = scmp.ne.s32.totalorder %s289, %s292
      %p298 = scmp.eq.s32.totalorder %s19, 0
      %p299 = por %p297, %p298
      %p300 = scmp.ne.s32.totalorder %s289, %s292
      %p301 = scmp.eq.s32.totalorder %s24, 3
      %p302 = por %p300, %p301
      %p303 = scmp.ne.s32.totalorder %s292, %s293
      %p304 = scmp.eq.s32.totalorder %s24, 0
      %p305 = por %p303, %p304
      %p306 = scmp.ne.s32.totalorder %s292, %s293
      %p307 = scmp.eq.s32.totalorder %s25, 3
      %p308 = por %p306, %p307
      %p310 = scmp.ne.s32.totalorder %s293, %s309
      %p311 = scmp.eq.s32.totalorder %s25, 0
      %p312 = por %p310, %p311
      %p313 = scmp.le.s32.totalorder 1, %s19
      %p314 = scmp.lt.s32.totalorder %s19, 5
      %p315 = pnand %p313, %p314
      %p316 = pneg %p315
      // Predicated region
      $region9: #{conv_downsampler.1} parent=5 // pred_check
        _
      $region10: #{conv_downsampler.1} parent=5 // pred_check_branch
        %318 = sbr.rel (%p315) target = $region12
      $region11: #{conv_downsampler.1} parent=5 // pred_region
        %s319 = ssub.s32 %s19, 1
        // Predicated region
        $region13: #{conv_downsampler.1} parent=11 // pred_check
          %p320 = pneg %p172
        $region14: #{conv_downsampler.1} parent=11 // pred_check_branch
          %322 = sbr.rel (%p320) target = $region16
        $region15: #{conv_downsampler.1} parent=11 // pred_region
          _
        $region16: #{conv_downsampler.1} parent=11 // pred_fallthru
          _
        // Predicated region
        $region17: #{conv_downsampler.1} parent=11 // pred_check
          %p323 = pneg %p193
        $region18: #{conv_downsampler.1} parent=11 // pred_check_branch
          %325 = sbr.rel (%p323) target = $region20
        $region19: #{conv_downsampler.1} parent=11 // pred_region
          _
        $region20: #{conv_downsampler.1} parent=11 // pred_fallthru
          _
        // Predicated region
        $region21: #{conv_downsampler.1} parent=11 // pred_check
          %p326 = pneg %p214
        $region22: #{conv_downsampler.1} parent=11 // pred_check_branch
          %328 = sbr.rel (%p326) target = $region24
        $region23: #{conv_downsampler.1} parent=11 // pred_region
          _
        $region24: #{conv_downsampler.1} parent=11 // pred_fallthru
          _
        // Predicated region
        $region25: #{conv_downsampler.1} parent=11 // pred_check
          %p329 = pneg %p235
        $region26: #{conv_downsampler.1} parent=11 // pred_check_branch
          %331 = sbr.rel (%p329) target = $region28
        $region27: #{conv_downsampler.1} parent=11 // pred_region
          _
        $region28: #{conv_downsampler.1} parent=11 // pred_fallthru
          _
        // Predicated region
        $region29: #{conv_downsampler.1} parent=11 // pred_check
          %p332 = pneg %p256
        $region30: #{conv_downsampler.1} parent=11 // pred_check_branch
          %334 = sbr.rel (%p332) target = $region32
        $region31: #{conv_downsampler.1} parent=11 // pred_region
          _
        $region32: #{conv_downsampler.1} parent=11 // pred_fallthru
          _
        // Predicated region
        $region33: #{conv_downsampler.1} parent=11 // pred_check
          %p335 = pneg %p277
        $region34: #{conv_downsampler.1} parent=11 // pred_check_branch
          %337 = sbr.rel (%p335) target = $region36
        $region35: #{conv_downsampler.1} parent=11 // pred_region
          _
        $region36: #{conv_downsampler.1} parent=11 // pred_fallthru
          _
      $region12: #{conv_downsampler.1} parent=5 // pred_fallthru
        _
      %p338 = scmp.lt.s32.totalorder %s19, 4
      // Predicated region
      $region37: #{conv_downsampler.1} parent=5 // pred_check
        %p339 = pneg %p338
      $region38: #{conv_downsampler.1} parent=5 // pred_check_branch
        %341 = sbr.rel (%p339) target = $region40
      $region39: #{conv_downsampler.1} parent=5 // pred_region
        // Predicated region
        $region41: #{conv_downsampler.1} parent=39 // pred_check
          %p342 = pneg %p53
        $region42: #{conv_downsampler.1} parent=39 // pred_check_branch
          %344 = sbr.rel (%p342) target = $region44
        $region43: #{conv_downsampler.1} parent=39 // pred_region
          %s345 = smul.u32 4, %s27
          %s346 = ssub.s32 9, %s345
          %p347 = scmp.lt.s32.totalorder %s346, 4
          %s348 = scalar_select %p347, %s346, 4
          %s349 = smul.u32 128, %s348
          %s350 = smul.u32 %s349, 2
          %p351 = scmp.lt.s32.totalorder %s26, 1
          %s352 = scalar_select %p351, %s26, 1
          %p353 = scmp.lt.s32.totalorder %s345, 8
          %s354 = scalar_select %p353, %s345, 8
          %s355 = smul.addr %s354, 2
          %s356 = smul.addr %s352, 18
          %s357 = sadd.s32 %s355, %s356
          %s358 = smul.addr %s357, 8
          %s359 = scalar_lea.vmem %s0, %s358
          %s360 = smul.u32 4, %s27
          %s361 = ssub.s32 9, %s360
          %p362 = scmp.lt.s32.totalorder %s361, 4
          %s363 = scalar_select %p362, %s361, 4
          %s364 = smul.u32 128, %s363
          %s365 = smul.u32 %s364, 2
        $region44: #{conv_downsampler.1} parent=39 // pred_fallthru
          _
        // Predicated region
        $region45: #{conv_downsampler.1} parent=39 // pred_check
          %p366 = pneg %p85
        $region46: #{conv_downsampler.1} parent=39 // pred_check_branch
          %368 = sbr.rel (%p366) target = $region48
        $region47: #{conv_downsampler.1} parent=39 // pred_region
          %s369 = sadd.s32 %s27, 1
          %s370 = smul.u32 %s369, 4
          %p371 = scmp.lt.s32.totalorder %s26, 1
          %s372 = scalar_select %p371, %s26, 1
          %p373 = scmp.lt.s32.totalorder %s370, 8
          %s374 = scalar_select %p373, %s370, 8
          %s375 = smul.addr %s374, 2
          %s376 = smul.addr %s372, 18
          %s377 = sadd.s32 %s375, %s376
          %s378 = smul.addr %s377, 8
          %s379 = scalar_lea.vmem %s1, %s378
          %s380 = sadd.s32 %s27, 1
          %s381 = smul.u32 %s380, 4
        $region48: #{conv_downsampler.1} parent=39 // pred_fallthru
          _
        // Predicated region
        $region49: #{conv_downsampler.1} parent=39 // pred_check
          %p382 = pneg %p113
        $region50: #{conv_downsampler.1} parent=39 // pred_check_branch
          %384 = sbr.rel (%p382) target = $region52
        $region51: #{conv_downsampler.1} parent=39 // pred_region
          %s385 = smul.u32 4, %s27
          %s386 = ssub.s32 9, %s385
          %p387 = scmp.lt.s32.totalorder %s386, 4
          %s388 = scalar_select %p387, %s386, 4
          %s389 = smul.u32 32, %s388
          %p390 = scmp.lt.s32.totalorder %s26, 1
          %s391 = scalar_select %p390, %s26, 1
          %p392 = scmp.lt.s32.totalorder %s385, 8
          %s393 = scalar_select %p392, %s385, 8
          %s394 = smul.addr %s391, 9
          %s395 = sadd.s32 %s393, %s394
          %s396 = smul.addr %s395, 2
          %s397 = scalar_lea.vmem %s2, %s396
          %s398 = smul.u32 4, %s27
          %s399 = ssub.s32 9, %s398
          %p400 = scmp.lt.s32.totalorder %s399, 4
          %s401 = scalar_select %p400, %s399, 4
          %s402 = smul.u32 32, %s401
        $region52: #{conv_downsampler.1} parent=39 // pred_fallthru
          _
        // Predicated region
        $region53: #{conv_downsampler.1} parent=39 // pred_check
          %p403 = pneg %p145
        $region54: #{conv_downsampler.1} parent=39 // pred_check_branch
          %405 = sbr.rel (%p403) target = $region56
        $region55: #{conv_downsampler.1} parent=39 // pred_region
          %s406 = sadd.s32 %s27, 1
          %s407 = smul.u32 %s406, 4
          %p408 = scmp.lt.s32.totalorder %s26, 1
          %s409 = scalar_select %p408, %s26, 1
          %p410 = scmp.lt.s32.totalorder %s407, 8
          %s411 = scalar_select %p410, %s407, 8
          %s412 = smul.addr %s409, 9
          %s413 = sadd.s32 %s411, %s412
          %s414 = smul.addr %s413, 2
          %s415 = scalar_lea.vmem %s3, %s414
          %s416 = sadd.s32 %s27, 1
          %s417 = smul.u32 %s416, 4
        $region56: #{conv_downsampler.1} parent=39 // pred_fallthru
          _
      $region40: #{conv_downsampler.1} parent=5 // pred_fallthru
        _
      %p418 = scmp.le.s32.totalorder 1, %s19
      %p419 = scmp.lt.s32.totalorder %s19, 5
      %p420 = pnand %p418, %p419
      %p421 = pneg %p420
      // Predicated region
      $region57: #{conv_downsampler.1} parent=5 // pred_check
        _
      $region58: #{conv_downsampler.1} parent=5 // pred_check_branch
        %423 = sbr.rel (%p420) target = $region60
      $region59: #{conv_downsampler.1} parent=5 // pred_region
        %s424 = ssub.s32 %s19, 1
        %s425 = smul.u32 4, %s29
        %s426 = ssub.s32 9, %s425
        %p427 = scmp.lt.s32.totalorder %s426, 4
        %s428 = scalar_select %p427, %s426, 4
        %s429 = smul.u32 128, %s428
        %s430 = smul.u32 %s429, 2
        %p431 = scmp.lt.s32.totalorder %s28, 1
        %s432 = scalar_select %p431, %s28, 1
        %p433 = scmp.lt.s32.totalorder %s425, 8
        %s434 = scalar_select %p433, %s425, 8
        %s435 = smul.addr %s434, 2
        %s436 = smul.addr %s432, 18
        %s437 = sadd.s32 %s435, %s436
        %s438 = smul.addr %s437, 8
        %s439 = scalar_lea.vmem %s0, %s438
        %p440 = pneg %p59
        %p441 = pneg %p56
        %s442 = sadd.s32 %s29, 1
        %s443 = smul.u32 %s442, 4
        %p444 = scmp.lt.s32.totalorder %s28, 1
        %s445 = scalar_select %p444, %s28, 1
        %p446 = scmp.lt.s32.totalorder %s443, 8
        %s447 = scalar_select %p446, %s443, 8
        %s448 = smul.addr %s447, 2
        %s449 = smul.addr %s445, 18
        %s450 = sadd.s32 %s448, %s449
        %s451 = smul.addr %s450, 8
        %s452 = scalar_lea.vmem %s1, %s451
        %p453 = pneg %p91
        %p454 = pneg %p88
        %s455 = smul.u32 4, %s29
        %s456 = ssub.s32 9, %s455
        %p457 = scmp.lt.s32.totalorder %s456, 4
        %s458 = scalar_select %p457, %s456, 4
        %s459 = smul.u32 32, %s458
        %p460 = scmp.lt.s32.totalorder %s28, 1
        %s461 = scalar_select %p460, %s28, 1
        %p462 = scmp.lt.s32.totalorder %s455, 8
        %s463 = scalar_select %p462, %s455, 8
        %s464 = smul.addr %s461, 9
        %s465 = sadd.s32 %s463, %s464
        %s466 = smul.addr %s465, 2
        %s467 = scalar_lea.vmem %s2, %s466
        %p468 = pneg %p119
        %p469 = pneg %p116
        %s470 = sadd.s32 %s29, 1
        %s471 = smul.u32 %s470, 4
        %p472 = scmp.lt.s32.totalorder %s28, 1
        %s473 = scalar_select %p472, %s28, 1
        %p474 = scmp.lt.s32.totalorder %s471, 8
        %s475 = scalar_select %p474, %s471, 8
        %s476 = smul.addr %s473, 9
        %s477 = sadd.s32 %s475, %s476
        %s478 = smul.addr %s477, 2
        %s479 = scalar_lea.vmem %s3, %s478
        %p480 = pneg %p151
        %p481 = pneg %p148
        %p482 = pneg %p172
        %p483 = pneg %p169
        %p484 = pneg %p193
        %p485 = pneg %p190
        %p486 = pneg %p214
        %p487 = pneg %p211
        %p488 = pneg %p235
        %p489 = pneg %p232
        %p490 = pneg %p256
        %p491 = pneg %p253
        %p492 = pneg %p277
        %p493 = pneg %p274
        %p494 = pneg %p305
        %p495 = pneg %p302
        %s496 = sand.u32 %s292, 1
        %s497 = scalar_lea.sflag [#allocation3], %s496
        %s498 = sand.u32 %s292, 1
        %s499 = smul.addr %s498, 32
        %s500 = scalar_lea.vmem [#allocation2], %s499
        %s501 = smul.u32 4, %s29
        %s502 = ssub.s32 9, %s501
        %p503 = scmp.lt.s32.totalorder %s502, 4
        %s504 = scalar_select %p503, %s502, 4
        %s505 = smul.u32 128, %s504
        %s506 = smul.u32 %s505, 2
        %p507 = scmp.lt.s32.totalorder %s28, 1
        %s508 = scalar_select %p507, %s28, 1
        %p509 = scmp.lt.s32.totalorder %s501, 8
        %s510 = scalar_select %p509, %s501, 8
        %s511 = smul.addr %s510, 2
        %s512 = smul.addr %s508, 18
        %s513 = sadd.s32 %s511, %s512
        %s514 = smul.addr %s513, 8
        %s515 = scalar_lea.vmem %s0, %s514
        %s516 = smul.u32 4, %s29
        %s517 = ssub.s32 9, %s516
        %p518 = scmp.lt.s32.totalorder %s517, 4
        %s519 = scalar_select %p518, %s517, 4
        %s520 = smul.u32 128, %s519
        %s521 = smul.u32 %s520, 2
        %s522 = sadd.s32 %s29, 1
        %s523 = smul.u32 %s522, 4
        %p524 = scmp.lt.s32.totalorder %s28, 1
        %s525 = scalar_select %p524, %s28, 1
        %p526 = scmp.lt.s32.totalorder %s523, 8
        %s527 = scalar_select %p526, %s523, 8
        %s528 = smul.addr %s527, 2
        %s529 = smul.addr %s525, 18
        %s530 = sadd.s32 %s528, %s529
        %s531 = smul.addr %s530, 8
        %s532 = scalar_lea.vmem %s1, %s531
        %s533 = sadd.s32 %s29, 1
        %s534 = smul.u32 %s533, 4
        %s535 = smul.u32 4, %s29
        %s536 = ssub.s32 9, %s535
        %p537 = scmp.lt.s32.totalorder %s536, 4
        %s538 = scalar_select %p537, %s536, 4
        %s539 = smul.u32 32, %s538
        %p540 = scmp.lt.s32.totalorder %s28, 1
        %s541 = scalar_select %p540, %s28, 1
        %p542 = scmp.lt.s32.totalorder %s535, 8
        %s543 = scalar_select %p542, %s535, 8
        %s544 = smul.addr %s541, 9
        %s545 = sadd.s32 %s543, %s544
        %s546 = smul.addr %s545, 2
        %s547 = scalar_lea.vmem %s2, %s546
        %s548 = smul.u32 4, %s29
        %s549 = ssub.s32 9, %s548
        %p550 = scmp.lt.s32.totalorder %s549, 4
        %s551 = scalar_select %p550, %s549, 4
        %s552 = smul.u32 32, %s551
        %s553 = sadd.s32 %s29, 1
        %s554 = smul.u32 %s553, 4
        %p555 = scmp.lt.s32.totalorder %s28, 1
        %s556 = scalar_select %p555, %s28, 1
        %p557 = scmp.lt.s32.totalorder %s554, 8
        %s558 = scalar_select %p557, %s554, 8
        %s559 = smul.addr %s556, 9
        %s560 = sadd.s32 %s558, %s559
        %s561 = smul.addr %s560, 2
        %s562 = scalar_lea.vmem %s3, %s561
        %s563 = sadd.s32 %s29, 1
        %s564 = smul.u32 %s563, 4
        %s565 = smul.u32 4, %s29
        %v566 = vld [vmem:[%s515] sm:$0xff]
        %v567 = vld [vmem:[%s515 + $0x10] sm:$0xff]
        %v568 = vld [vmem:[%s515 + $0x20] sm:$0xff]
        %v569 = vld [vmem:[%s515 + $0x30] sm:$0xff]
        %s570 = scalar_lea.vmem %s515, 8
        %v571 = vld [vmem:[%s570] sm:$0xff]
        %v572 = vld [vmem:[%s570 + $0x10] sm:$0xff]
        %v573 = vld [vmem:[%s570 + $0x20] sm:$0xff]
        %v574 = vld [vmem:[%s570 + $0x30] sm:$0xff]
        %579 = vrot.lane.b32.xlu0 %v571, 4
        %v580 = vpop.permute.xlu0 %579
        %581 = vrot.lane.b32.xlu0 %v572, 4
        %v582 = vpop.permute.xlu0 %581
        %583 = vrot.lane.b32.xlu0 %v573, 4
        %v584 = vpop.permute.xlu0 %583
        %585 = vrot.lane.b32.xlu0 %v574, 4
        %v586 = vpop.permute.xlu0 %585
        %vm591 = vcmask 31744
        %v592 = vsel %vm591, %v566, %v580
        %v593 = vsel %vm591, %v567, %v582
        %v594 = vsel %vm591, %v568, %v584
        %v595 = vsel %vm591, %v569, %v586
        %v596 = vld [vmem:[%s547] sm:$0x3]
        %v598 = vunpack.c.l.s4 1934713408
        %v599 = vunpack.c.0.s8 %v598
        %v600 = vlaneseq
        %v601 = vshrl.u32 %v600, 7
        %v602 = vsub.s32 %v599, %v601
        %v603 = vrot.slane %v596, %v602
        %v604 = vcombine.high %v603, 0.0
        %v605 = vld [vmem:[%s547 + $0x2] sm:$0x3]
        %v607 = vunpack.c.l.s4 1934713408
        %v608 = vunpack.c.0.s8 %v607
        %v609 = vlaneseq
        %v610 = vshrl.u32 %v609, 7
        %v611 = vsub.s32 %v608, %v610
        %v612 = vrot.slane %v605, %v611
        %v613 = vcombine.high %v612, 0.0
        %v614 = vld [vmem:[%s547 + $0x4] sm:$0x3]
        %v616 = vunpack.c.l.s4 1934713408
        %v617 = vunpack.c.0.s8 %v616
        %v618 = vlaneseq
        %v619 = vshrl.u32 %v618, 7
        %v620 = vsub.s32 %v617, %v619
        %v621 = vrot.slane %v614, %v620
        %v622 = vcombine.high %v621, 0.0
        %v623 = vld [vmem:[%s547 + $0x6] sm:$0x3]
        %v625 = vunpack.c.l.s4 1934713408
        %v626 = vunpack.c.0.s8 %v625
        %v627 = vlaneseq
        %v628 = vshrl.u32 %v627, 7
        %v629 = vsub.s32 %v626, %v628
        %v630 = vrot.slane %v623, %v629
        %v631 = vcombine.high %v630, 0.0
        %636 = vrot.lane.b32.xlu0 %v604, 4
        %v637 = vpop.permute.xlu0 %636
        %638 = vrot.lane.b32.xlu0 %v613, 4
        %v639 = vpop.permute.xlu0 %638
        %640 = vrot.lane.b32.xlu0 %v622, 4
        %v641 = vpop.permute.xlu0 %640
        %642 = vrot.lane.b32.xlu0 %v631, 4
        %v643 = vpop.permute.xlu0 %642
        %v648 = vsel %vm591, %v603, %v637
        %v649 = vsel %vm591, %v612, %v639
        %v650 = vsel %vm591, %v621, %v641
        %v651 = vsel %vm591, %v630, %v643
        %v656 = vrot.slane %v592, 1
        %v657 = vrot.slane %v593, 1
        %v658 = vrot.slane %v594, 1
        %v659 = vrot.slane %v595, 1
        %v668 = vrot.slane %v648, 1
        %v669 = vrot.slane %v649, 1
        %v670 = vrot.slane %v650, 1
        %v671 = vrot.slane %v651, 1
        %vm676 = vcmask 1046528
        %v677 = vsel %vm676, %v656, %v668
        %v678 = vsel %vm676, %v657, %v669
        %v679 = vsel %vm676, %v658, %v670
        %v680 = vsel %vm676, %v659, %v671
        %v681 = vld [vmem:[%s532] sm:$0xff]
        %v682 = vld [vmem:[%s562] sm:$0x3]
        %v684 = vrot.slane %v681, 1
        %v687 = vrot.slane %v682, 1
        %v689 = vsel %vm676, %v684, %v687
        %691 = vrot.lane.b32.xlu0 %v689, 8
        %v692 = vpop.permute.xlu0 %691
        %vm694 = vcmask 64512
        %v695 = vsel %vm694, %v681, %v692
        %v696 = vld [vmem:[%s4] sm:$0xff]
        %v697 = vld [vmem:[%s4 + $0x8] sm:$0xff]
        %v699 = vsel %vm694, %v566, 0
        %v702 = vsel %vm694, %v567, 0
        %v705 = vsel %vm694, %v568, 0
        %v708 = vsel %vm694, %v569, 0
        %710 = vmatprep.subr.mxu0 0.0
        %711 = vmatpush1.msra.mxu0 0.0
        %712 = vmatprep.subr.mxu0 0.0
        %713 = vmatpush1.msra.mxu0 0.0
        %714 = vmatprep.subr.mxu0 0.0
        %715 = vmatpush1.msra.mxu0 0.0
        %716 = vmatprep.subr.mxu0 0.0
        %717 = vmatpush1.msra.mxu0 0.0
        %718 = vmatprep.subr.mxu0 0.0
        %719 = vmatpush1.msra.mxu0 0.0
        %720 = vmatprep.subr.mxu0 0.0
        %721 = vmatpush1.msra.mxu0 0.0
        %722 = vmatprep.subr.mxu0 0.0
        %723 = vmatpush1.msra.mxu0 0.0
        %724 = vmatprep.subr.mxu0 0.0
        %725 = vmatpush1.msra.mxu0 0.0
        %726 = vmatprep.subr.mxu0 0.0
        %727 = vmatpush1.msra.mxu0 0.0
        %728 = vmatprep.subr.mxu0 0.0
        %729 = vmatpush1.msra.mxu0 0.0
        %730 = vmatprep.subr.mxu0 0.0
        %731 = vmatpush1.msra.mxu0 0.0
        %732 = vmatprep.subr.mxu0 0.0
        %733 = vmatpush1.msra.mxu0 0.0
        %734 = vmatprep.subr.mxu0 0.0
        %735 = vmatpush1.msra.mxu0 0.0
        %736 = vmatprep.subr.mxu0 0.0
        %737 = vmatpush1.msra.mxu0 0.0
        %738 = vmatprep.subr.mxu0 0.0
        %739 = vmatpush1.msra.mxu0 0.0
        %740 = vmatprep.subr.mxu0 %v697
        %741 = vmatpush1.msra.mxu0 %v696
        %742 = vmatprep.subr.mxu0 0.0
        %743 = vmatpush2.msra.mxu0 0.0
        %744 = vmatprep.subr.mxu0 0.0
        %745 = vmatpush2.msra.mxu0 0.0
        %746 = vmatprep.subr.mxu0 0.0
        %747 = vmatpush2.msra.mxu0 0.0
        %748 = vmatprep.subr.mxu0 0.0
        %749 = vmatpush2.msra.mxu0 0.0
        %750 = vmatprep.subr.mxu0 0.0
        %751 = vmatpush2.msra.mxu0 0.0
        %752 = vmatprep.subr.mxu0 0.0
        %753 = vmatpush2.msra.mxu0 0.0
        %754 = vmatprep.subr.mxu0 0.0
        %755 = vmatpush2.msra.mxu0 0.0
        %756 = vmatprep.subr.mxu0 0.0
        %757 = vmatpush2.msra.mxu0 0.0
        %758 = vmatprep.subr.mxu0 0.0
        %759 = vmatpush2.msra.mxu0 0.0
        %760 = vmatprep.subr.mxu0 0.0
        %761 = vmatpush2.msra.mxu0 0.0
        %762 = vmatprep.subr.mxu0 0.0
        %763 = vmatpush2.msra.mxu0 0.0
        %764 = vmatprep.subr.mxu0 0.0
        %765 = vmatpush2.msra.mxu0 0.0
        %766 = vmatprep.subr.mxu0 0.0
        %767 = vmatpush2.msra.mxu0 0.0
        %768 = vmatprep.subr.mxu0 0.0
        %769 = vmatpush2.msra.mxu0 0.0
        %770 = vmatprep.subr.mxu0 0.0
        %771 = vmatpush2.msra.mxu0 0.0
        %772 = vmatprep.subr.mxu0 0.0
        %773 = vmatpush2.msra.mxu0 0.0
        %774 = vmatprep.mubr.f32.mxu0 0.0
        %775 = vmatmul.mubr.f32.gmra.mxu0 %v699
        %v776 = vpop.f32.mrf.mxu0
        %v777 = vadd.f32 0.0, %v776
        %v778 = vpop.f32.mrf.mxu0
        %779 = vmatprep.mubr.f32.mxu0 0.0
        %780 = vmatmul.mubr.f32.gmra.mxu0 %v702
        %v781 = vpop.f32.mrf.mxu0
        %v782 = vadd.f32 0.0, %v781
        %v783 = vpop.f32.mrf.mxu0
        %v784 = vadd.f32 0.0, %v783
        %785 = vmatprep.mubr.f32.mxu0 0.0
        %786 = vmatmul.mubr.f32.gmra.mxu0 %v705
        %v787 = vpop.f32.mrf.mxu0
        %v788 = vadd.f32 0.0, %v787
        %v789 = vpop.f32.mrf.mxu0
        %v790 = vadd.f32 0.0, %v789
        %791 = vmatprep.mubr.f32.mxu0 0.0
        %792 = vmatmul.mubr.f32.gmra.mxu0 %v708
        %v793 = vpop.f32.mrf.mxu0
        %v794 = vadd.f32 0.0, %v793
        %v795 = vpop.f32.mrf.mxu0
        %v796 = vadd.f32 0.0, %v795
        %797 = vdwg.mxu0
        %v798 = vld [vmem:[%s5] sm:$0xff]
        %v799 = vsel %vm694, %v571, 0
        %v801 = vsel %vm694, %v572, 0
        %v803 = vsel %vm694, %v573, 0
        %v805 = vsel %vm694, %v574, 0
        %807 = vmatprep.subr.mxu0 0.0
        %808 = vmatpush1.msra.mxu0 0.0
        %809 = vmatprep.subr.mxu0 0.0
        %810 = vmatpush1.msra.mxu0 0.0
        %811 = vmatprep.subr.mxu0 0.0
        %812 = vmatpush1.msra.mxu0 0.0
        %813 = vmatprep.subr.mxu0 0.0
        %814 = vmatpush1.msra.mxu0 0.0
        %815 = vmatprep.subr.mxu0 0.0
        %816 = vmatpush1.msra.mxu0 0.0
        %817 = vmatprep.subr.mxu0 0.0
        %818 = vmatpush1.msra.mxu0 0.0
        %819 = vmatprep.subr.mxu0 0.0
        %820 = vmatpush1.msra.mxu0 0.0
        %821 = vmatprep.subr.mxu0 0.0
        %822 = vmatpush1.msra.mxu0 0.0
        %823 = vmatprep.subr.mxu0 0.0
        %824 = vmatpush1.msra.mxu0 0.0
        %825 = vmatprep.subr.mxu0 0.0
        %826 = vmatpush1.msra.mxu0 0.0
        %827 = vmatprep.subr.mxu0 0.0
        %828 = vmatpush1.msra.mxu0 0.0
        %829 = vmatprep.subr.mxu0 0.0
        %830 = vmatpush1.msra.mxu0 0.0
        %831 = vmatprep.subr.mxu0 0.0
        %832 = vmatpush1.msra.mxu0 0.0
        %833 = vmatprep.subr.mxu0 0.0
        %834 = vmatpush1.msra.mxu0 0.0
        %835 = vmatprep.subr.mxu0 0.0
        %836 = vmatpush1.msra.mxu0 0.0
        %837 = vmatprep.subr.mxu0 0.0
        %838 = vmatpush1.msra.mxu0 %v798
        %839 = vmatprep.subr.mxu0 0.0
        %840 = vmatpush2.msra.mxu0 0.0
        %841 = vmatprep.subr.mxu0 0.0
        %842 = vmatpush2.msra.mxu0 0.0
        %843 = vmatprep.subr.mxu0 0.0
        %844 = vmatpush2.msra.mxu0 0.0
        %845 = vmatprep.subr.mxu0 0.0
        %846 = vmatpush2.msra.mxu0 0.0
        %847 = vmatprep.subr.mxu0 0.0
        %848 = vmatpush2.msra.mxu0 0.0
        %849 = vmatprep.subr.mxu0 0.0
        %850 = vmatpush2.msra.mxu0 0.0
        %851 = vmatprep.subr.mxu0 0.0
        %852 = vmatpush2.msra.mxu0 0.0
        %853 = vmatprep.subr.mxu0 0.0
        %854 = vmatpush2.msra.mxu0 0.0
        %855 = vmatprep.subr.mxu0 0.0
        %856 = vmatpush2.msra.mxu0 0.0
        %857 = vmatprep.subr.mxu0 0.0
        %858 = vmatpush2.msra.mxu0 0.0
        %859 = vmatprep.subr.mxu0 0.0
        %860 = vmatpush2.msra.mxu0 0.0
        %861 = vmatprep.subr.mxu0 0.0
        %862 = vmatpush2.msra.mxu0 0.0
        %863 = vmatprep.subr.mxu0 0.0
        %864 = vmatpush2.msra.mxu0 0.0
        %865 = vmatprep.subr.mxu0 0.0
        %866 = vmatpush2.msra.mxu0 0.0
        %867 = vmatprep.subr.mxu0 0.0
        %868 = vmatpush2.msra.mxu0 0.0
        %869 = vmatprep.subr.mxu0 0.0
        %870 = vmatpush2.msra.mxu0 0.0
        %871 = vmatprep.mubr.f32.mxu0 0.0
        %872 = vmatmul.mubr.f32.gmra.mxu0 %v799
        %v873 = vpop.f32.mrf.mxu0
        %v874 = vadd.f32 0.0, %v873
        %v875 = vpop.f32.mrf.mxu0
        %876 = vmatprep.mubr.f32.mxu0 0.0
        %877 = vmatmul.mubr.f32.gmra.mxu0 %v801
        %v878 = vpop.f32.mrf.mxu0
        %v879 = vadd.f32 0.0, %v878
        %v880 = vpop.f32.mrf.mxu0
        %881 = vmatprep.mubr.f32.mxu0 0.0
        %882 = vmatmul.mubr.f32.gmra.mxu0 %v803
        %v883 = vpop.f32.mrf.mxu0
        %v884 = vadd.f32 0.0, %v883
        %v885 = vpop.f32.mrf.mxu0
        %886 = vmatprep.mubr.f32.mxu0 0.0
        %887 = vmatmul.mubr.f32.gmra.mxu0 %v805
        %v888 = vpop.f32.mrf.mxu0
        %v889 = vadd.f32 0.0, %v888
        %v890 = vpop.f32.mrf.mxu0
        %891 = vdwg.mxu0
        %v892 = vld [vmem:[%s6] sm:$0xff]
        %v893 = vld [vmem:[%s6 + $0x8] sm:$0xff]
        %v895 = vsel %vm694, %v677, 0
        %v898 = vsel %vm694, %v678, 0
        %v901 = vsel %vm694, %v679, 0
        %v904 = vsel %vm694, %v680, 0
        %906 = vmatprep.subr.mxu0 0.0
        %907 = vmatpush1.msra.mxu0 0.0
        %908 = vmatprep.subr.mxu0 0.0
        %909 = vmatpush1.msra.mxu0 0.0
        %910 = vmatprep.subr.mxu0 0.0
        %911 = vmatpush1.msra.mxu0 0.0
        %912 = vmatprep.subr.mxu0 0.0
        %913 = vmatpush1.msra.mxu0 0.0
        %914 = vmatprep.subr.mxu0 0.0
        %915 = vmatpush1.msra.mxu0 0.0
        %916 = vmatprep.subr.mxu0 0.0
        %917 = vmatpush1.msra.mxu0 0.0
        %918 = vmatprep.subr.mxu0 0.0
        %919 = vmatpush1.msra.mxu0 0.0
        %920 = vmatprep.subr.mxu0 0.0
        %921 = vmatpush1.msra.mxu0 0.0
        %922 = vmatprep.subr.mxu0 0.0
        %923 = vmatpush1.msra.mxu0 0.0
        %924 = vmatprep.subr.mxu0 0.0
        %925 = vmatpush1.msra.mxu0 0.0
        %926 = vmatprep.subr.mxu0 0.0
        %927 = vmatpush1.msra.mxu0 0.0
        %928 = vmatprep.subr.mxu0 0.0
        %929 = vmatpush1.msra.mxu0 0.0
        %930 = vmatprep.subr.mxu0 0.0
        %931 = vmatpush1.msra.mxu0 0.0
        %932 = vmatprep.subr.mxu0 0.0
        %933 = vmatpush1.msra.mxu0 0.0
        %934 = vmatprep.subr.mxu0 0.0
        %935 = vmatpush1.msra.mxu0 0.0
        %936 = vmatprep.subr.mxu0 %v893
        %937 = vmatpush1.msra.mxu0 %v892
        %938 = vmatprep.subr.mxu0 0.0
        %939 = vmatpush2.msra.mxu0 0.0
        %940 = vmatprep.subr.mxu0 0.0
        %941 = vmatpush2.msra.mxu0 0.0
        %942 = vmatprep.subr.mxu0 0.0
        %943 = vmatpush2.msra.mxu0 0.0
        %944 = vmatprep.subr.mxu0 0.0
        %945 = vmatpush2.msra.mxu0 0.0
        %946 = vmatprep.subr.mxu0 0.0
        %947 = vmatpush2.msra.mxu0 0.0
        %948 = vmatprep.subr.mxu0 0.0
        %949 = vmatpush2.msra.mxu0 0.0
        %950 = vmatprep.subr.mxu0 0.0
        %951 = vmatpush2.msra.mxu0 0.0
        %952 = vmatprep.subr.mxu0 0.0
        %953 = vmatpush2.msra.mxu0 0.0
        %954 = vmatprep.subr.mxu0 0.0
        %955 = vmatpush2.msra.mxu0 0.0
        %956 = vmatprep.subr.mxu0 0.0
        %957 = vmatpush2.msra.mxu0 0.0
        %958 = vmatprep.subr.mxu0 0.0
        %959 = vmatpush2.msra.mxu0 0.0
        %960 = vmatprep.subr.mxu0 0.0
        %961 = vmatpush2.msra.mxu0 0.0
        %962 = vmatprep.subr.mxu0 0.0
        %963 = vmatpush2.msra.mxu0 0.0
        %964 = vmatprep.subr.mxu0 0.0
        %965 = vmatpush2.msra.mxu0 0.0
        %966 = vmatprep.subr.mxu0 0.0
        %967 = vmatpush2.msra.mxu0 0.0
        %968 = vmatprep.subr.mxu0 0.0
        %969 = vmatpush2.msra.mxu0 0.0
        %970 = vmatprep.mubr.f32.mxu0 0.0
        %971 = vmatmul.mubr.f32.gmra.mxu0 %v895
        %v972 = vpop.f32.mrf.mxu0
        %v973 = vadd.f32 0.0, %v972
        %v974 = vpop.f32.mrf.mxu0
        %975 = vmatprep.mubr.f32.mxu0 0.0
        %976 = vmatmul.mubr.f32.gmra.mxu0 %v898
        %v977 = vpop.f32.mrf.mxu0
        %v978 = vadd.f32 0.0, %v977
        %v979 = vpop.f32.mrf.mxu0
        %v980 = vadd.f32 0.0, %v979
        %981 = vmatprep.mubr.f32.mxu0 0.0
        %982 = vmatmul.mubr.f32.gmra.mxu0 %v901
        %v983 = vpop.f32.mrf.mxu0
        %v984 = vadd.f32 0.0, %v983
        %v985 = vpop.f32.mrf.mxu0
        %v986 = vadd.f32 0.0, %v985
        %987 = vmatprep.mubr.f32.mxu0 0.0
        %988 = vmatmul.mubr.f32.gmra.mxu0 %v904
        %v989 = vpop.f32.mrf.mxu0
        %v990 = vadd.f32 0.0, %v989
        %v991 = vpop.f32.mrf.mxu0
        %v992 = vadd.f32 0.0, %v991
        %993 = vdwg.mxu0
        %v994 = vld [vmem:[%s7] sm:$0xff]
        %v995 = vld [vmem:[%s7 + $0x8] sm:$0xf]
        %vm996 = vcmask 97280
        %v998 = vsel %vm996, %v695, 0
        %vm1000 = vcmask 1043456
        %v1002 = vsel %vm1000, %v995, 0
        %1004 = vmatprep.subr.mxu0 0.0
        %1005 = vmatpush1.msra.mxu0 0.0
        %1006 = vmatprep.subr.mxu0 0.0
        %1007 = vmatpush1.msra.mxu0 0.0
        %1008 = vmatprep.subr.mxu0 0.0
        %1009 = vmatpush1.msra.mxu0 0.0
        %1010 = vmatprep.subr.mxu0 0.0
        %1011 = vmatpush1.msra.mxu0 0.0
        %1012 = vmatprep.subr.mxu0 0.0
        %1013 = vmatpush1.msra.mxu0 0.0
        %1014 = vmatprep.subr.mxu0 0.0
        %1015 = vmatpush1.msra.mxu0 0.0
        %1016 = vmatprep.subr.mxu0 0.0
        %1017 = vmatpush1.msra.mxu0 0.0
        %1018 = vmatprep.subr.mxu0 0.0
        %1019 = vmatpush1.msra.mxu0 0.0
        %1020 = vmatprep.subr.mxu0 0.0
        %1021 = vmatpush1.msra.mxu0 0.0
        %1022 = vmatprep.subr.mxu0 0.0
        %1023 = vmatpush1.msra.mxu0 0.0
        %1024 = vmatprep.subr.mxu0 0.0
        %1025 = vmatpush1.msra.mxu0 0.0
        %1026 = vmatprep.subr.mxu0 0.0
        %1027 = vmatpush1.msra.mxu0 0.0
        %1028 = vmatprep.subr.mxu0 0.0
        %1029 = vmatpush1.msra.mxu0 0.0
        %1030 = vmatprep.subr.mxu0 0.0
        %1031 = vmatpush1.msra.mxu0 0.0
        %1032 = vmatprep.subr.mxu0 0.0
        %1033 = vmatpush1.msra.mxu0 %v1002
        %1034 = vmatprep.subr.mxu0 0.0
        %1035 = vmatpush1.msra.mxu0 %v994
        %1036 = vmatprep.subr.mxu0 0.0
        %1037 = vmatpush2.msra.mxu0 0.0
        %1038 = vmatprep.subr.mxu0 0.0
        %1039 = vmatpush2.msra.mxu0 0.0
        %1040 = vmatprep.subr.mxu0 0.0
        %1041 = vmatpush2.msra.mxu0 0.0
        %1042 = vmatprep.subr.mxu0 0.0
        %1043 = vmatpush2.msra.mxu0 0.0
        %1044 = vmatprep.subr.mxu0 0.0
        %1045 = vmatpush2.msra.mxu0 0.0
        %1046 = vmatprep.subr.mxu0 0.0
        %1047 = vmatpush2.msra.mxu0 0.0
        %1048 = vmatprep.subr.mxu0 0.0
        %1049 = vmatpush2.msra.mxu0 0.0
        %1050 = vmatprep.subr.mxu0 0.0
        %1051 = vmatpush2.msra.mxu0 0.0
        %1052 = vmatprep.subr.mxu0 0.0
        %1053 = vmatpush2.msra.mxu0 0.0
        %1054 = vmatprep.subr.mxu0 0.0
        %1055 = vmatpush2.msra.mxu0 0.0
        %1056 = vmatprep.subr.mxu0 0.0
        %1057 = vmatpush2.msra.mxu0 0.0
        %1058 = vmatprep.subr.mxu0 0.0
        %1059 = vmatpush2.msra.mxu0 0.0
        %1060 = vmatprep.subr.mxu0 0.0
        %1061 = vmatpush2.msra.mxu0 0.0
        %1062 = vmatprep.subr.mxu0 0.0
        %1063 = vmatpush2.msra.mxu0 0.0
        %1064 = vmatprep.subr.mxu0 0.0
        %1065 = vmatpush2.msra.mxu0 0.0
        %1066 = vmatprep.subr.mxu0 0.0
        %1067 = vmatpush2.msra.mxu0 0.0
        %1068 = vmatprep.mubr.f32.mxu0 0.0
        %1069 = vmatmul.mubr.f32.gmra.mxu0 %v998
        %v1070 = vpop.f32.mrf.mxu0
        %v1071 = vadd.f32 0.0, %v1070
        %v1072 = vpop.f32.mrf.mxu0
        %1073 = vdwg.mxu0
        %v1074 = vadd.f32 %v777, %v874
        %v1075 = vadd.f32 %v782, %v879
        %v1076 = vadd.f32 %v788, %v884
        %v1077 = vadd.f32 %v794, %v889
        %v1078 = vadd.f32 %v1074, %v973
        %v1079 = vadd.f32 %v1075, %v978
        %v1080 = vadd.f32 %v1076, %v984
        %v1081 = vadd.f32 %v1077, %v990
        %v1082 = vadd.f32 %v784, %v980
        %v1083 = vadd.f32 %v790, %v986
        %v1084 = vadd.f32 %v796, %v992
        %v1085 = vadd.f32 %v1078, %v1082
        %v1086 = vadd.f32 %v1079, %v1083
        %v1087 = vadd.f32 %v1080, %v1084
        %v1088 = vadd.f32 %v1081, %v1071
        %1089 = vadd.xlane.f32.xlu0 %v1085
        %v1090 = vpop.xlane.xlu0 %1089
        %1091 = vadd.xlane.f32.xlu0 %v1086
        %v1092 = vpop.xlane.xlu0 %1091
        %1093 = vadd.xlane.f32.xlu0 %v1087
        %v1094 = vpop.xlane.xlu0 %1093
        %1095 = vadd.xlane.f32.xlu0 %v1088
        %v1096 = vpop.xlane.xlu0 %1095
        %v1097 = vmul.f32 %v1085, %v1085
        %v1098 = vmul.f32 %v1086, %v1086
        %v1099 = vmul.f32 %v1087, %v1087
        %v1100 = vmul.f32 %v1088, %v1088
        %1101 = vadd.xlane.f32.xlu0 %v1097
        %v1102 = vpop.xlane.xlu0 %1101
        %1103 = vadd.xlane.f32.xlu0 %v1098
        %v1104 = vpop.xlane.xlu0 %1103
        %1105 = vadd.xlane.f32.xlu0 %v1099
        %v1106 = vpop.xlane.xlu0 %1105
        %1107 = vadd.xlane.f32.xlu0 %v1100
        %v1108 = vpop.xlane.xlu0 %1107
        %v1109 = vmul.f32 %v1090, 0.125
        %v1110 = vmul.f32 %v1092, 0.125
        %v1111 = vmul.f32 %v1094, 0.125
        %v1112 = vmul.f32 %v1096, 0.125
        %v1113 = vmul.f32 %v1102, 0.125
        %v1114 = vmul.f32 %v1104, 0.125
        %v1115 = vmul.f32 %v1106, 0.125
        %v1116 = vmul.f32 %v1108, 0.125
        %v1117 = vmul.f32 %v1109, %v1109
        %v1118 = vmul.f32 %v1110, %v1110
        %v1119 = vmul.f32 %v1111, %v1111
        %v1120 = vmul.f32 %v1112, %v1112
        %v1121 = vsub.f32 %v1113, %v1117
        %v1122 = vsub.f32 %v1114, %v1118
        %v1123 = vsub.f32 %v1115, %v1119
        %v1124 = vsub.f32 %v1116, %v1120
        %v1125 = vmax.f32 %v1121, 0.0
        %v1126 = vmax.f32 %v1122, 0.0
        %v1127 = vmax.f32 %v1123, 0.0
        %v1128 = vmax.f32 %v1124, 0.0
        %v1129 = vadd.f32 %v1125, 1e-05
        %v1130 = vadd.f32 %v1126, 1e-05
        %v1131 = vadd.f32 %v1127, 1e-05
        %v1132 = vadd.f32 %v1128, 1e-05
        %v1133 = vrsqrt.pop %v1129
        %v1134 = vrsqrt.pop %v1130
        %v1135 = vrsqrt.pop %v1131
        %v1136 = vrsqrt.pop %v1132
        %v1137 = vsub.f32 %v1085, %v1109
        %v1138 = vsub.f32 %v1086, %v1110
        %v1139 = vsub.f32 %v1087, %v1111
        %v1140 = vsub.f32 %v1088, %v1112
        %v1141 = vmul.f32 %v1137, %v1133
        %v1142 = vmul.f32 %v1138, %v1134
        %v1143 = vmul.f32 %v1139, %v1135
        %v1144 = vmul.f32 %v1140, %v1136
        %v1145 = vld [vmem:[%s8] sm:$0x1]
        %v1147 = vlaneseq
        %v1148 = vshrl.u32 %v1147, 7
        %v1149 = vsub.s32 0, %v1148
        %v1150 = vrot.slane %v1145, %v1149
        %v1152 = vmul.f32 %v1141, %v1150
        %v1153 = vmul.f32 %v1142, %v1150
        %v1154 = vmul.f32 %v1143, %v1150
        %v1155 = vmul.f32 %v1144, %v1150
        %v1156 = vld [vmem:[%s9] sm:$0x1]
        %v1158 = vlaneseq
        %v1159 = vshrl.u32 %v1158, 7
        %v1160 = vsub.s32 0, %v1159
        %v1161 = vrot.slane %v1156, %v1160
        %v1163 = vadd.f32 %v1152, %v1161
        %v1164 = vadd.f32 %v1153, %v1161
        %v1165 = vadd.f32 %v1154, %v1161
        %v1166 = vadd.f32 %v1155, %v1161
        %1167 = vst [vmem:[%s500] sm:$0xff] %v1163
        %1168 = vst [vmem:[%s500 + $0x8] sm:$0xff] %v1164
        %1169 = vst [vmem:[%s500 + $0x10] sm:$0xff] %v1165
        %1170 = vst [vmem:[%s500 + $0x18] sm:$0xff] %v1166
        %s1171 = sand.u32 %s292, 1
        %s1172 = scalar_lea.sflag [#allocation3], %s1171
        %s1173 = sand.u32 %s292, 1
        %s1174 = smul.addr %s1173, 32
        %s1175 = scalar_lea.vmem [#allocation2], %s1174
        // Predicated region
        $region61: #{conv_downsampler.1} parent=59 // pred_check
          %p1176 = pneg %p302
        $region62: #{conv_downsampler.1} parent=59 // pred_check_branch
          %1178 = sbr.rel (%p1176) target = $region64
        $region63: #{conv_downsampler.1} parent=59 // pred_region
          %s1179 = smul.u32 4, %s29
          %s1181 = ssub.s32 512, 512
          %1182 = vsyncadd %s1172, %s1181
          %s1183 = smul.addr %s28, 8
          %s1184 = sadd.s32 %s1179, %s1183
          %s1185 = smul.addr %s1184, 128
          %s1186 = scalar_lea.hbm %s10, %s1185
          %s1187 = sshll.u32 %s1175, 4
          %s1188 = int_to_ptr.vmem [resolvable:$true] %s1187
          %1193 = dma.vmem_to_hbm [thread:$0]  %s1188, 512, %s1186, %s1172, 128, 128, 8
        $region64: #{conv_downsampler.1} parent=59 // pred_fallthru
          _
      $region60: #{conv_downsampler.1} parent=5 // pred_fallthru
        _
      %p1194 = scmp.le.s32.totalorder 2, %s19
      // Predicated region
      $region65: #{conv_downsampler.1} parent=5 // pred_check
        %p1195 = pneg %p1194
      $region66: #{conv_downsampler.1} parent=5 // pred_check_branch
        %1197 = sbr.rel (%p1195) target = $region68
      $region67: #{conv_downsampler.1} parent=5 // pred_region
        %s1198 = ssub.s32 %s19, 2
        // Predicated region
        $region69: #{conv_downsampler.1} parent=67 // pred_check
          %p1199 = pneg %p308
        $region70: #{conv_downsampler.1} parent=67 // pred_check_branch
          %1201 = sbr.rel (%p1199) target = $region72
        $region71: #{conv_downsampler.1} parent=67 // pred_region
          %s1202 = sand.u32 %s293, 1
          %s1203 = scalar_lea.sflag [#allocation3], %s1202
          %s1204 = sand.u32 %s293, 1
          %s1205 = smul.addr %s1204, 32
          %s1206 = scalar_lea.vmem [#allocation2], %s1205
          %1207 = dma.done %s1203, 512
        $region72: #{conv_downsampler.1} parent=67 // pred_fallthru
          _
      $region68: #{conv_downsampler.1} parent=5 // pred_fallthru
        _
    $region6: #{conv_downsampler.1} parent=1 // loop_footer
      %s23 = sadd.s32 1, %s19
    $region7: #{conv_downsampler.1} parent=1 // loop_footer_branch
      %18 = sbr.rel target = $region3
    $region8: #{conv_downsampler.1} parent=1 // loop_exit
      _
    %1208 = vsyncpa [#allocation3], 1
    %s1209 = scalar_lea.sflag [#allocation3], 1
    %1210 = vsyncpa %s1209, 1

</llo_original>
